<compile_context>
chip_gen: v7x
topology: tpu7x:2x2x1
jax: 0.10.0
libtpu: 0.0.40
codegen_flags: <defaults>
</compile_context>

<pallas_src>
import itertools

import numpy as np
import jax
import jax.numpy as jnp
from jax.experimental import pallas as pl
from jax.experimental.pallas import tpu as pltpu


def _round_up(n, m):
    return ((n + m - 1) // m) * m


# --------------------------- shared forward math --------------------------- #

def _forward_math(x, pool, scale,
                  we, be, wm, bm,
                  vw1, vb1, vw2, vb2,
                  rw1, rb1, rw2, rb2):
    """Math shared by the fused Pallas kernel and the pure-JAX reference.

    x     : (M, P)  bf16 patch rows (zero-padded lanes / rows allowed)
    pool  : (B, M)  bf16 unit-weight pooling matrix (1.0 on each image's rows)
    scale : (B, 1)  f32  per-image 1/Ng
    weights bf16, biases f32.  Returns (tok_bf16, view_f32, region_f32).
    """
    f32, bf16 = jnp.float32, jnp.bfloat16
    # Synthetic backbone: patch embed -> fused linear+GELU mixer (fc/head == Identity).
    # TODO(synk): PyTorch nn.GELU defaults to the exact erf form; keep the tanh
    # approximation here (guaranteed Mosaic lowering for tanh on the EUP).
    emb = jnp.dot(x, we, preferred_element_type=f32) + be                    # (M, Dp)
    tok = jax.nn.gelu(jnp.dot(emb.astype(bf16), wm,
                              preferred_element_type=f32) + bm)              # (M, Dp)
    tok_bf = tok.astype(bf16)
    # _cls = per-image mean over tokens: unit-weight pooling matmul on the MXU,
    # then the exact f32 1/Ng scale on the VPU (padded rows have zero weight).
    cls = jnp.dot(pool, tok_bf, preferred_element_type=f32) * scale          # (B, Dp)
    # view head (2-layer MLP) on cls
    vh = jax.nn.gelu(jnp.dot(cls.astype(bf16), vw1,
                             preferred_element_type=f32) + vb1)
    view = jnp.dot(vh.astype(bf16), vw2, preferred_element_type=f32) + vb2   # (B, Dp)
    # region head (2-layer MLP) on every token row
    rh = jax.nn.gelu(jnp.dot(tok_bf, rw1,
                             preferred_element_type=f32) + rb1)
    region = jnp.dot(rh.astype(bf16), rw2, preferred_element_type=f32) + rb2  # (M, Dp)
    return tok_bf, view, region


def _fused_kernel(patches_ref, pool_ref, scale_ref, w_ref, b_ref,
                  tok_ref, view_ref, region_ref):
    # Weight slab: [w_embed, w_mix, view_w1, view_w2, region_w1, region_w2]
    # Bias slab  : [b_embed, b_mix, view_b1, view_b2, region_b1, region_b2]
    tok_bf, view, region = _forward_math(
        patches_ref[...], pool_ref[...], scale_ref[...],
        w_ref[0], b_ref[0:1, :],
        w_ref[1], b_ref[1:2, :],
        w_ref[2], b_ref[2:3, :],
        w_ref[3], b_ref[3:4, :],
        w_ref[4], b_ref[4:5, :],
        w_ref[5], b_ref[5:6, :])
    tok_ref[...] = tok_bf                                  # bf16 writeback
    view_ref[...] = view                                   # tiny, stays f32
    region_ref[...] = region.astype(region_ref.dtype)      # bf16 writeback


# ------------------------------- host glue ---------------------------------- #

def extract_patches(x, patch_size):
    """NCHW image -> (B, N, patch_size*patch_size*C) patches (host-side glue).

    # TODO(synk): fold this 6-D transpose into the kernel's input DMA via an
    # (nh, nw) index_map; negligible at these toy crop sizes.
    """
    B, C, H, W = x.shape
    p = patch_size
    nh, nw = H // p, W // p
    x = x.reshape(B, C, nh, p, nw, p)
    x = x.transpose(0, 2, 4, 3, 5, 1)   # B, nh, nw, p, p, C
    return x.reshape(B, nh * nw, p * p * C)


def _group_by_resolution(x):
    """torch.cumsum(torch.unique_consecutive(resolutions, return_counts)[1], 0)
    — resolutions are static, so this is plain-Python bookkeeping.  Returns a
    list of (start, end) crop index ranges."""
    resolutions = [int(inp.shape[-1]) for inp in x]
    counts, prev = [], None
    for r in resolutions:
        if counts and r == prev:
            counts[-1] += 1
        else:
            counts.append(1)
        prev = r
    idx = list(itertools.accumulate(counts))
    return list(zip([0] + idx[:-1], idx))


# --------------------------- MultiCropWrapper ------------------------------- #

def multi_crop_wrapper_forward(x, backbone_params, view_head_params,
                               region_head_params):
    if not isinstance(x, (list, tuple)):
        x = [x]
    groups = _group_by_resolution(x)

    ps = backbone_params["patch_size"]
    C = backbone_params["embed_dim"]
    O = view_head_params["out_dim"]
    Dp = backbone_params["w_embed"].shape[1]          # common 128-aligned padded dim

    # Stack every group's REAL token rows (no padding of local crops up to the
    # global token count).  Row order already matches the module's cat() order:
    # groups in order, image-major / token-minor within a group.
    row_blocks, group_info = [], []
    roff = ioff = 0
    for s, e in groups:
        batch = jnp.concatenate(x[s:e], axis=0)       # club same-resolution crops
        p = extract_patches(batch, ps)                # (Bg, Ng, P0)
        Bg, Ng, P0 = p.shape
        row_blocks.append(p.reshape(Bg * Ng, P0))
        group_info.append((Bg, Ng, roff, ioff))
        roff += Bg * Ng
        ioff += Bg
    M_real, B_total = roff, ioff
    M = _round_up(M_real, 8)                          # sublane-aligned token rows
    Bp = _round_up(B_total, 8)                        # sublane-aligned cls rows

    # Patch slab built directly in bf16: one concat + one pad.
    patches = jnp.concatenate(row_blocks, axis=0).astype(jnp.bfloat16)   # (M_real, P0)
    P0 = patches.shape[-1]
    patches = jnp.pad(patches, ((0, M - M_real), (0, Dp - P0)))          # (M, Dp)

    # Block-diagonal unit-weight pooling matrix + per-image 1/Ng f32 scale.
    # Padded token rows (>= M_real) and padded cls rows (>= B_total) carry zero
    # weight / zero scale and are sliced away below — keep that invariant.
    pool = np.zeros((Bp, M), np.float32)
    scale = np.zeros((Bp, 1), np.float32)
    for Bg, Ng, r0, i0 in group_info:
        for b in range(Bg):
            pool[i0 + b, r0 + b * Ng: r0 + (b + 1) * Ng] = 1.0
            scale[i0 + b, 0] = 1.0 / Ng
    pool = jnp.asarray(pool, jnp.bfloat16)
    scale = jnp.asarray(scale, jnp.float32)

    # Pack the 12 weight/bias operands into two slabs (5 kernel operands total).
    w_slab = jnp.stack([backbone_params["w_embed"], backbone_params["w_mix"],
                        view_head_params["w1"], view_head_params["w2"],
                        region_head_params["w1"], region_head_params["w2"]])   # (6,Dp,Dp) bf16
    b_slab = jnp.concatenate([backbone_params["b_embed"], backbone_params["b_mix"],
                              view_head_params["b1"], view_head_params["b2"],
                              region_head_params["b1"], region_head_params["b2"]],
                             axis=0)                                           # (6,Dp)  f32

    # Advisory cost estimate for XLA scheduling of the single custom call.
    flops = 2 * (4 * M * Dp * Dp + Bp * M * Dp + 2 * Bp * Dp * Dp)
    transcendentals = 2 * M * Dp + Bp * Dp
    bytes_accessed = int(patches.size * 2 + pool.size * 2 + scale.size * 4
                         + w_slab.size * 2 + b_slab.size * 4
                         + M * Dp * 2 + Bp * Dp * 4 + M * Dp * 2)

    tok_full, view_full, region_full = pl.pallas_call(
        _fused_kernel,
        out_shape=(
            jax.ShapeDtypeStruct((M, Dp), jnp.bfloat16),    # tok (bf16 writeback)
            jax.ShapeDtypeStruct((Bp, Dp), jnp.float32),    # view-head output
            jax.ShapeDtypeStruct((M, Dp), jnp.bfloat16),    # region-head output
        ),
        compiler_params=pltpu.CompilerParams(
            vmem_limit_bytes=32 * 1024 * 1024),
        cost_estimate=pl.CostEstimate(flops=flops,
                                      transcendentals=transcendentals,
                                      bytes_accessed=bytes_accessed),
    )(patches, pool, scale, w_slab, b_slab)
    # TODO(synk): for realistic crop sizes (M in the tens of thousands) add an
    # M-tiled "parallel" grid axis (weights resident via constant index_map,
    # cls pooled via a pl.when-finalized accumulator) for v7x megacore balance
    # and VMEM headroom; at these sizes a single invocation is fastest.

    # Rows are already in the module's output order -> epilogue is pure slicing.
    view_out = view_full[:B_total, :O].astype(jnp.float32)
    tok_out = tok_full[:M_real, :C].astype(jnp.float32)
    region_out = region_full[:M_real, :O].astype(jnp.float32)
    num_tok = [Ng for (_, Ng, _, _) in group_info]
    return view_out, region_out, tok_out, num_tok


# ------------------------- pure-JAX reference ------------------------------- #

def _reference_forward(x, backbone_params, view_head_params, region_head_params):
    """Plain-JAX (no Pallas, no row stacking) mirror of the PyTorch forward,
    using the same bf16-matmul / f32-epilogue math as the fused kernel."""
    if not isinstance(x, (list, tuple)):
        x = [x]
    ps = backbone_params["patch_size"]
    C = backbone_params["embed_dim"]
    O = view_head_params["out_dim"]
    view_parts, tok_parts, region_parts, num_tok = [], [], [], []
    for s, e in _group_by_resolution(x):
        batch = jnp.concatenate(x[s:e], axis=0)
        patches = extract_patches(batch, ps)
        Bg, Ng, P0 = patches.shape
        pool = np.zeros((Bg, Bg * Ng), np.float32)
        for b in range(Bg):
            pool[b, b * Ng:(b + 1) * Ng] = 1.0
        scale = np.full((Bg, 1), 1.0 / Ng, np.float32)
        tok, view, region = _forward_math(
            patches.reshape(Bg * Ng, P0).astype(jnp.bfloat16),
            jnp.asarray(pool, jnp.bfloat16), jnp.asarray(scale, jnp.float32),
            backbone_params["w_embed"][:P0], backbone_params["b_embed"],
            backbone_params["w_mix"], backbone_params["b_mix"],
            view_head_params["w1"], view_head_params["b1"],
            view_head_params["w2"], view_head_params["b2"],
            region_head_params["w1"], region_head_params["b1"],
            region_head_params["w2"], region_head_params["b2"])
        view_parts.append(view[:, :O])
        tok_parts.append(tok[:, :C].astype(jnp.float32))
        region_parts.append(region[:, :O])
        num_tok.append(Ng)
    return (jnp.concatenate(view_parts, axis=0),
            jnp.concatenate(region_parts, axis=0),
            jnp.concatenate(tok_parts, axis=0),
            num_tok)


# ------------------------------- params ------------------------------------- #

def _init_params(key, *, c_in, patch_size, embed_dim, head_hidden, head_out):
    """Synthetic backbone + DINO-style heads.  All matmul dims are zero-padded
    ONCE here to a common 128-lane-aligned size Dp (so every weight is a
    (Dp, Dp) bf16 tile and all outputs are lane-dense); biases stay f32 for
    the f32 epilogue."""
    patch_dim = patch_size * patch_size * c_in
    Dp = max(_round_up(d, 128)
             for d in (patch_dim, embed_dim, head_hidden, head_out))
    ks = jax.random.split(key, 10)
    sc = 0.02

    def w(k, r, c):
        full = sc * jax.random.normal(k, (r, c), dtype=jnp.float32)
        return jnp.pad(full, ((0, Dp - r), (0, Dp - c))).astype(jnp.bfloat16)

    def b(k, n):
        full = sc * jax.random.normal(k, (1, n), dtype=jnp.float32)
        return jnp.pad(full, ((0, 0), (0, Dp - n)))        # f32

    backbone = {
        "patch_size": patch_size,
        "embed_dim": embed_dim,
        "w_embed": w(ks[0], patch_dim, embed_dim),
        "b_embed": b(ks[1], embed_dim),
        "w_mix": w(ks[2], embed_dim, embed_dim),
        "b_mix": b(ks[3], embed_dim),
    }
    view_head = {
        "out_dim": head_out,
        "w1": w(ks[4], embed_dim, head_hidden),
        "b1": b(ks[5], head_hidden),
        "w2": w(ks[6], head_hidden, head_out),
        "b2": b(ks[7], head_out),
    }
    region_head = {
        "out_dim": head_out,
        "w1": w(ks[8], embed_dim, head_hidden),
        "b1": jnp.zeros((1, Dp), jnp.float32),
        "w2": w(ks[9], head_hidden, head_out),
        "b2": jnp.zeros((1, Dp), jnp.float32),
    }
    return backbone, view_head, region_head


# --------------------------------- main -------------------------------------- #

if __name__ == "__main__":
    key = jax.random.PRNGKey(0)
    k_in, k_params = jax.random.split(key)

    # Multi-crop input list (NCHW): two global 16x16 crops, two local 8x8 crops.
    B, C_in = 2, 4
    k1, k2, k3, k4 = jax.random.split(k_in, 4)
    crops = [
        jax.random.normal(k1, (B, C_in, 16, 16), dtype=jnp.float32),
        jax.random.normal(k2, (B, C_in, 16, 16), dtype=jnp.float32),
        jax.random.normal(k3, (B, C_in, 8, 8), dtype=jnp.float32),
        jax.random.normal(k4, (B, C_in, 8, 8), dtype=jnp.float32),
    ]

    patch_size = 4
    embed_dim = 32
    head_hidden = 64
    head_out = 48

    backbone_p, view_head_p, region_head_p = _init_params(
        k_params, c_in=C_in, patch_size=patch_size, embed_dim=embed_dim,
        head_hidden=head_hidden, head_out=head_out)

    view_out, region_out, tok_out, num_tok = multi_crop_wrapper_forward(
        crops, backbone_p, view_head_p, region_head_p)
    jax.block_until_ready((view_out, region_out, tok_out))

    # Shapes implied by the PyTorch forward.
    total_batch = B * len(crops)                   # cls rows
    total_tokens = 2 * B * 16 + 2 * B * 4          # region rows
    assert view_out.shape == (total_batch, head_out)
    assert region_out.shape == (total_tokens, head_out)
    assert tok_out.shape == (total_tokens, embed_dim)
    assert num_tok == [16, 4]

    # Numerical check against a pure-JAX reference using identical math.
    ref_view, ref_region, ref_tok, ref_num = _reference_forward(
        crops, backbone_p, view_head_p, region_head_p)
    assert ref_num == num_tok
    for name, got, ref in (("view", view_out, ref_view),
                           ("region", region_out, ref_region),
                           ("tok", tok_out, ref_tok)):
        denom = float(jnp.max(jnp.abs(ref))) + 1e-8
        rel = float(jnp.max(jnp.abs(got - ref))) / denom
        assert rel < 1e-2, f"{name} mismatch: relative error {rel}"

    print("KERNEL_OK")
</pallas_src>

<mosaic_0001>
module attributes {stable_mosaic.version = 11 : i64} {
  func.func @_fused_kernel(%arg0: memref<80x128xbf16, #tpu.memory_space<vmem>>, %arg1: memref<8x80xbf16, #tpu.memory_space<vmem>>, %arg2: memref<8x1xf32, #tpu.memory_space<vmem>>, %arg3: memref<6x128x128xbf16, #tpu.memory_space<vmem>>, %arg4: memref<6x128xf32, #tpu.memory_space<vmem>>, %arg5: memref<80x128xbf16, #tpu.memory_space<vmem>>, %arg6: memref<8x128xf32, #tpu.memory_space<vmem>>, %arg7: memref<80x128xbf16, #tpu.memory_space<vmem>>) attributes {dimension_semantics = [], scalar_prefetch = 0 : i64, scratch_operands = 0 : i64, tpu.core_type = #tpu.core_type<tc>} {
    %c0 = arith.constant 0 : index
    %c0_0 = arith.constant 0 : index
    %0 = vector.load %arg0[%c0, %c0_0] : memref<80x128xbf16, #tpu.memory_space<vmem>>, vector<80x128xbf16>
    %c0_1 = arith.constant 0 : index
    %c0_2 = arith.constant 0 : index
    %1 = vector.load %arg1[%c0_1, %c0_2] : memref<8x80xbf16, #tpu.memory_space<vmem>>, vector<8x80xbf16>
    %c0_3 = arith.constant 0 : index
    %c0_4 = arith.constant 0 : index
    %2 = vector.load %arg2[%c0_3, %c0_4] : memref<8x1xf32, #tpu.memory_space<vmem>>, vector<8x1xf32>
    %c0_5 = arith.constant 0 : index
    %c0_6 = arith.constant 0 : index
    %c0_7 = arith.constant 0 : index
    %3 = vector.load %arg3[%c0_5, %c0_6, %c0_7] : memref<6x128x128xbf16, #tpu.memory_space<vmem>>, vector<1x128x128xbf16>
    %4 = vector.shape_cast %3 : vector<1x128x128xbf16> to vector<128x128xbf16>
    %c0_8 = arith.constant 0 : index
    %c0_9 = arith.constant 0 : index
    %5 = vector.load %arg4[%c0_8, %c0_9] : memref<6x128xf32, #tpu.memory_space<vmem>>, vector<1x128xf32>
    %c1 = arith.constant 1 : index
    %c0_10 = arith.constant 0 : index
    %c0_11 = arith.constant 0 : index
    %6 = vector.load %arg3[%c1, %c0_10, %c0_11] : memref<6x128x128xbf16, #tpu.memory_space<vmem>>, vector<1x128x128xbf16>
    %7 = vector.shape_cast %6 : vector<1x128x128xbf16> to vector<128x128xbf16>
    %c1_12 = arith.constant 1 : index
    %c0_13 = arith.constant 0 : index
    %8 = vector.load %arg4[%c1_12, %c0_13] : memref<6x128xf32, #tpu.memory_space<vmem>>, vector<1x128xf32>
    %c2 = arith.constant 2 : index
    %c0_14 = arith.constant 0 : index
    %c0_15 = arith.constant 0 : index
    %9 = vector.load %arg3[%c2, %c0_14, %c0_15] : memref<6x128x128xbf16, #tpu.memory_space<vmem>>, vector<1x128x128xbf16>
    %10 = vector.shape_cast %9 : vector<1x128x128xbf16> to vector<128x128xbf16>
    %c2_16 = arith.constant 2 : index
    %c0_17 = arith.constant 0 : index
    %11 = vector.load %arg4[%c2_16, %c0_17] : memref<6x128xf32, #tpu.memory_space<vmem>>, vector<1x128xf32>
    %c3 = arith.constant 3 : index
    %c0_18 = arith.constant 0 : index
    %c0_19 = arith.constant 0 : index
    %12 = vector.load %arg3[%c3, %c0_18, %c0_19] : memref<6x128x128xbf16, #tpu.memory_space<vmem>>, vector<1x128x128xbf16>
    %13 = vector.shape_cast %12 : vector<1x128x128xbf16> to vector<128x128xbf16>
    %c3_20 = arith.constant 3 : index
    %c0_21 = arith.constant 0 : index
    %14 = vector.load %arg4[%c3_20, %c0_21] : memref<6x128xf32, #tpu.memory_space<vmem>>, vector<1x128xf32>
    %c4 = arith.constant 4 : index
    %c0_22 = arith.constant 0 : index
    %c0_23 = arith.constant 0 : index
    %15 = vector.load %arg3[%c4, %c0_22, %c0_23] : memref<6x128x128xbf16, #tpu.memory_space<vmem>>, vector<1x128x128xbf16>
    %16 = vector.shape_cast %15 : vector<1x128x128xbf16> to vector<128x128xbf16>
    %c4_24 = arith.constant 4 : index
    %c0_25 = arith.constant 0 : index
    %17 = vector.load %arg4[%c4_24, %c0_25] : memref<6x128xf32, #tpu.memory_space<vmem>>, vector<1x128xf32>
    %c5 = arith.constant 5 : index
    %c0_26 = arith.constant 0 : index
    %c0_27 = arith.constant 0 : index
    %18 = vector.load %arg3[%c5, %c0_26, %c0_27] : memref<6x128x128xbf16, #tpu.memory_space<vmem>>, vector<1x128x128xbf16>
    %19 = vector.shape_cast %18 : vector<1x128x128xbf16> to vector<128x128xbf16>
    %c5_28 = arith.constant 5 : index
    %c0_29 = arith.constant 0 : index
    %20 = vector.load %arg4[%c5_28, %c0_29] : memref<6x128xf32, #tpu.memory_space<vmem>>, vector<1x128xf32>
    %cst = arith.constant dense<0.000000e+00> : vector<80x128xf32>
    %21 = tpu.matmul %0, %4, %cst {dimension_numbers = #tpu.dot_dimension_numbers<[1], [0], [0], [1], [0, 0, 1, 1], [], []>} : vector<80x128xbf16>, vector<128x128xbf16>, vector<80x128xf32> -> vector<80x128xf32>
    %22 = vector.broadcast %5 : vector<1x128xf32> to vector<80x128xf32>
    %23 = arith.addf %21, %22 : vector<80x128xf32>
    %24 = arith.truncf %23 : vector<80x128xf32> to vector<80x128xbf16>
    %cst_30 = arith.constant dense<0.000000e+00> : vector<80x128xf32>
    %25 = tpu.matmul %24, %7, %cst_30 {dimension_numbers = #tpu.dot_dimension_numbers<[1], [0], [0], [1], [0, 0, 1, 1], [], []>} : vector<80x128xbf16>, vector<128x128xbf16>, vector<80x128xf32> -> vector<80x128xf32>
    %26 = vector.broadcast %8 : vector<1x128xf32> to vector<80x128xf32>
    %27 = arith.addf %25, %26 : vector<80x128xf32>
    %28 = arith.mulf %27, %27 : vector<80x128xf32>
    %29 = arith.mulf %27, %28 : vector<80x128xf32>
    %cst_31 = arith.constant 4.471500e-02 : f32
    %30 = vector.broadcast %cst_31 : f32 to vector<80x128xf32>
    %31 = arith.mulf %30, %29 : vector<80x128xf32>
    %32 = arith.addf %27, %31 : vector<80x128xf32>
    %cst_32 = arith.constant 0.797884583 : f32
    %33 = vector.broadcast %cst_32 : f32 to vector<80x128xf32>
    %34 = arith.mulf %33, %32 : vector<80x128xf32>
    %35 = math.tanh %34 : vector<80x128xf32>
    %cst_33 = arith.constant 1.000000e+00 : f32
    %36 = vector.broadcast %cst_33 : f32 to vector<80x128xf32>
    %37 = arith.addf %36, %35 : vector<80x128xf32>
    %cst_34 = arith.constant 5.000000e-01 : f32
    %38 = vector.broadcast %cst_34 : f32 to vector<80x128xf32>
    %39 = arith.mulf %38, %37 : vector<80x128xf32>
    %40 = arith.mulf %27, %39 : vector<80x128xf32>
    %41 = arith.truncf %40 : vector<80x128xf32> to vector<80x128xbf16>
    %cst_35 = arith.constant dense<0.000000e+00> : vector<8x128xf32>
    %42 = tpu.matmul %1, %41, %cst_35 {dimension_numbers = #tpu.dot_dimension_numbers<[1], [0], [0], [1], [0, 0, 1, 1], [], []>} : vector<8x80xbf16>, vector<80x128xbf16>, vector<8x128xf32> -> vector<8x128xf32>
    %43 = vector.broadcast %2 : vector<8x1xf32> to vector<8x128xf32>
    %44 = arith.mulf %42, %43 : vector<8x128xf32>
    %45 = arith.truncf %44 : vector<8x128xf32> to vector<8x128xbf16>
    %cst_36 = arith.constant dense<0.000000e+00> : vector<8x128xf32>
    %46 = tpu.matmul %45, %10, %cst_36 {dimension_numbers = #tpu.dot_dimension_numbers<[1], [0], [0], [1], [0, 0, 1, 1], [], []>} : vector<8x128xbf16>, vector<128x128xbf16>, vector<8x128xf32> -> vector<8x128xf32>
    %47 = vector.broadcast %11 : vector<1x128xf32> to vector<8x128xf32>
    %48 = arith.addf %46, %47 : vector<8x128xf32>
    %49 = arith.mulf %48, %48 : vector<8x128xf32>
    %50 = arith.mulf %48, %49 : vector<8x128xf32>
    %cst_37 = arith.constant 4.471500e-02 : f32
    %51 = vector.broadcast %cst_37 : f32 to vector<8x128xf32>
    %52 = arith.mulf %51, %50 : vector<8x128xf32>
    %53 = arith.addf %48, %52 : vector<8x128xf32>
    %cst_38 = arith.constant 0.797884583 : f32
    %54 = vector.broadcast %cst_38 : f32 to vector<8x128xf32>
    %55 = arith.mulf %54, %53 : vector<8x128xf32>
    %56 = math.tanh %55 : vector<8x128xf32>
    %cst_39 = arith.constant 1.000000e+00 : f32
    %57 = vector.broadcast %cst_39 : f32 to vector<8x128xf32>
    %58 = arith.addf %57, %56 : vector<8x128xf32>
    %cst_40 = arith.constant 5.000000e-01 : f32
    %59 = vector.broadcast %cst_40 : f32 to vector<8x128xf32>
    %60 = arith.mulf %59, %58 : vector<8x128xf32>
    %61 = arith.mulf %48, %60 : vector<8x128xf32>
    %62 = arith.truncf %61 : vector<8x128xf32> to vector<8x128xbf16>
    %cst_41 = arith.constant dense<0.000000e+00> : vector<8x128xf32>
    %63 = tpu.matmul %62, %13, %cst_41 {dimension_numbers = #tpu.dot_dimension_numbers<[1], [0], [0], [1], [0, 0, 1, 1], [], []>} : vector<8x128xbf16>, vector<128x128xbf16>, vector<8x128xf32> -> vector<8x128xf32>
    %64 = vector.broadcast %14 : vector<1x128xf32> to vector<8x128xf32>
    %65 = arith.addf %63, %64 : vector<8x128xf32>
    %cst_42 = arith.constant dense<0.000000e+00> : vector<80x128xf32>
    %66 = tpu.matmul %41, %16, %cst_42 {dimension_numbers = #tpu.dot_dimension_numbers<[1], [0], [0], [1], [0, 0, 1, 1], [], []>} : vector<80x128xbf16>, vector<128x128xbf16>, vector<80x128xf32> -> vector<80x128xf32>
    %67 = vector.broadcast %17 : vector<1x128xf32> to vector<80x128xf32>
    %68 = arith.addf %66, %67 : vector<80x128xf32>
    %69 = arith.mulf %68, %68 : vector<80x128xf32>
    %70 = arith.mulf %68, %69 : vector<80x128xf32>
    %cst_43 = arith.constant 4.471500e-02 : f32
    %71 = vector.broadcast %cst_43 : f32 to vector<80x128xf32>
    %72 = arith.mulf %71, %70 : vector<80x128xf32>
    %73 = arith.addf %68, %72 : vector<80x128xf32>
    %cst_44 = arith.constant 0.797884583 : f32
    %74 = vector.broadcast %cst_44 : f32 to vector<80x128xf32>
    %75 = arith.mulf %74, %73 : vector<80x128xf32>
    %76 = math.tanh %75 : vector<80x128xf32>
    %cst_45 = arith.constant 1.000000e+00 : f32
    %77 = vector.broadcast %cst_45 : f32 to vector<80x128xf32>
    %78 = arith.addf %77, %76 : vector<80x128xf32>
    %cst_46 = arith.constant 5.000000e-01 : f32
    %79 = vector.broadcast %cst_46 : f32 to vector<80x128xf32>
    %80 = arith.mulf %79, %78 : vector<80x128xf32>
    %81 = arith.mulf %68, %80 : vector<80x128xf32>
    %82 = arith.truncf %81 : vector<80x128xf32> to vector<80x128xbf16>
    %cst_47 = arith.constant dense<0.000000e+00> : vector<80x128xf32>
    %83 = tpu.matmul %82, %19, %cst_47 {dimension_numbers = #tpu.dot_dimension_numbers<[1], [0], [0], [1], [0, 0, 1, 1], [], []>} : vector<80x128xbf16>, vector<128x128xbf16>, vector<80x128xf32> -> vector<80x128xf32>
    %84 = vector.broadcast %20 : vector<1x128xf32> to vector<80x128xf32>
    %85 = arith.addf %83, %84 : vector<80x128xf32>
    %c0_48 = arith.constant 0 : index
    %c0_49 = arith.constant 0 : index
    %86 = vector.load %arg5[%c0_48, %c0_49] : memref<80x128xbf16, #tpu.memory_space<vmem>>, vector<80x128xbf16>
    tpu.vector_store %arg5[%c0_48, %c0_49], %41 {strides = array<i32>} : memref<80x128xbf16, #tpu.memory_space<vmem>>, vector<80x128xbf16>,
    %c0_50 = arith.constant 0 : index
    %c0_51 = arith.constant 0 : index
    %87 = vector.load %arg6[%c0_50, %c0_51] : memref<8x128xf32, #tpu.memory_space<vmem>>, vector<8x128xf32>
    tpu.vector_store %arg6[%c0_50, %c0_51], %65 {strides = array<i32>} : memref<8x128xf32, #tpu.memory_space<vmem>>, vector<8x128xf32>,
    %88 = arith.truncf %85 : vector<80x128xf32> to vector<80x128xbf16>
    %c0_52 = arith.constant 0 : index
    %c0_53 = arith.constant 0 : index
    %89 = vector.load %arg7[%c0_52, %c0_53] : memref<80x128xbf16, #tpu.memory_space<vmem>>, vector<80x128xbf16>
    tpu.vector_store %arg7[%c0_52, %c0_53], %88 {strides = array<i32>} : memref<80x128xbf16, #tpu.memory_space<vmem>>, vector<80x128xbf16>,
    return
  }
}

</mosaic_0001>

<llo_original>
// kernel: tpu_custom_call.1
$region0: #{tpu_custom_call.1}
  #allocation0 [shape = 'u32[]', space=smem, size = 0x4, offset = 0x4, fixed_abs, tag = 'smem constant byte address 0x4 - core index']
  #allocation1 [shape = 'u32[144,128]{1,0:T(1,128)}', space=vmem, size = 0x12000, scoped, tag = 'internal scratch']
  %s0 = inlined_call_operand.hbm [shape: bf16[80,128], index: 0, kind: input, shape index: {}]
  %s1 = inlined_call_operand.vmem [shape: bf16[8,80], index: 1, kind: input, shape index: {}]
  %s2 = inlined_call_operand.vmem [shape: f32[8,1], index: 2, kind: input, shape index: {}]
  %s3 = inlined_call_operand.hbm [shape: bf16[6,128,128], index: 3, kind: input, shape index: {}]
  %s4 = inlined_call_operand.vmem [shape: f32[6,128], index: 4, kind: input, shape index: {}]
  %s5 = inlined_call_operand.hbm [shape: bf16[80,128], index: 5, kind: output, shape index: {0}]
  %s6 = inlined_call_operand.hbm [shape: f32[8,128], index: 6, kind: output, shape index: {1}]
  %s7 = inlined_call_operand.hbm [shape: bf16[80,128], index: 7, kind: output, shape index: {2}]
  %8 = xla_tuple %s5, %s6, %s7
  %s9 = sld [smem:[#allocation0]]
  $region54: #{tpu_custom_call.1} parent=0
    _
  %s11 = ssub.s32 1, %s9
  %s12 = scalar_select 0, %s11, %s9
  $region1: #{tpu_custom_call.1} parent=0
    #allocation2 [shape = 'u8[20480]{0}', space=vmem, size = 0x5000, scoped, tag = 'input window, operand 0, single buffered']
    #allocation3 [shape = 's32[1]{0}', space=sflag, size = 0x4, scoped, tag = 'scoped memory for tpu_custom_call.1']
    #allocation4 [shape = 's32[1]{0}', space=sflag, size = 0x4, scoped, tag = 'scoped memory for tpu_custom_call.1']
    #allocation5 [shape = 'u8[196608]{0}', space=vmem, size = 0x30000, scoped, tag = 'input window, operand 3, single buffered']
    #allocation6 [shape = 's32[1]{0}', space=sflag, size = 0x4, scoped, tag = 'scoped memory for tpu_custom_call.1']
    #allocation7 [shape = 'u8[20480]{0}', space=vmem, size = 0x5000, scoped, tag = 'output window, operand 0, single buffered']
    #allocation8 [shape = 'u8[4096]{0}', space=vmem, size = 0x1000, scoped, tag = 'output window, operand 1, single buffered']
    #allocation9 [shape = 's32[1]{0}', space=sflag, size = 0x4, scoped, tag = 'scoped memory for tpu_custom_call.1']
    #allocation10 [shape = 'u8[20480]{0}', space=vmem, size = 0x5000, scoped, tag = 'output window, operand 2, single buffered']
    %13 = vsyncpa [#allocation3], 0
    %14 = vsyncpa [#allocation6], 0
    %15 = vsyncpa [#allocation4], 0
    %16 = vsyncpa [#allocation9], 0
    // Predicated region
    $region2: #{tpu_custom_call.1} parent=1 // pred_check
      _
    $region3: #{tpu_custom_call.1} parent=1 // pred_check_branch
      %18 = sbr.rel (0) target = $region5
    $region4: #{tpu_custom_call.1} parent=1 // pred_region
      %s20 = ssub.s32 640, 640
      %21 = vsyncadd [#allocation3], %s20
      %s22 = sshll.u32 [#allocation2], 4
      %s23 = int_to_ptr.vmem [resolvable:$true] %s22
      %28 = dma.hbm_to_vmem [thread:$0]  %s0, 640, %s23, [#allocation3], 64, 64, 4
    $region5: #{tpu_custom_call.1} parent=1 // pred_fallthru
      _
    // Predicated region
    $region6: #{tpu_custom_call.1} parent=1 // pred_check
      _
    $region7: #{tpu_custom_call.1} parent=1 // pred_check_branch
      %30 = sbr.rel (0) target = $region9
    $region8: #{tpu_custom_call.1} parent=1 // pred_region
      _
    $region9: #{tpu_custom_call.1} parent=1 // pred_fallthru
      _
    // Predicated region
    $region10: #{tpu_custom_call.1} parent=1 // pred_check
      _
    $region11: #{tpu_custom_call.1} parent=1 // pred_check_branch
      %32 = sbr.rel (0) target = $region13
    $region12: #{tpu_custom_call.1} parent=1 // pred_region
      _
    $region13: #{tpu_custom_call.1} parent=1 // pred_fallthru
      _
    // Predicated region
    $region14: #{tpu_custom_call.1} parent=1 // pred_check
      _
    $region15: #{tpu_custom_call.1} parent=1 // pred_check_branch
      %34 = sbr.rel (0) target = $region17
    $region16: #{tpu_custom_call.1} parent=1 // pred_region
      %s36 = ssub.s32 6144, 6144
      %37 = vsyncadd [#allocation6], %s36
      %s38 = sshll.u32 [#allocation5], 4
      %s39 = int_to_ptr.vmem [resolvable:$true] %s38
      %44 = dma.hbm_to_vmem [thread:$0]  %s3, 6144, %s39, [#allocation6], 64, 64, 4
    $region17: #{tpu_custom_call.1} parent=1 // pred_fallthru
      _
    // Predicated region
    $region18: #{tpu_custom_call.1} parent=1 // pred_check
      _
    $region19: #{tpu_custom_call.1} parent=1 // pred_check_branch
      %46 = sbr.rel (0) target = $region21
    $region20: #{tpu_custom_call.1} parent=1 // pred_region
      _
    $region21: #{tpu_custom_call.1} parent=1 // pred_fallthru
      _
    // Predicated region
    $region22: #{tpu_custom_call.1} parent=1 // pred_check
      _
    $region23: #{tpu_custom_call.1} parent=1 // pred_check_branch
      %48 = sbr.rel (0) target = $region25
    $region24: #{tpu_custom_call.1} parent=1 // pred_region
      %49 = dma.done [#allocation3], 640
    $region25: #{tpu_custom_call.1} parent=1 // pred_fallthru
      _
    // Predicated region
    $region26: #{tpu_custom_call.1} parent=1 // pred_check
      _
    $region27: #{tpu_custom_call.1} parent=1 // pred_check_branch
      %51 = sbr.rel (0) target = $region29
    $region28: #{tpu_custom_call.1} parent=1 // pred_region
      %52 = dma.done [#allocation6], 6144
    $region29: #{tpu_custom_call.1} parent=1 // pred_fallthru
      _
    %v54 = vld [vmem:[#allocation2] sm:$0xf]
    %v55 = vld [vmem:[#allocation2 + $0x4] sm:$0xf]
    %v56 = vld [vmem:[#allocation2 + $0x8] sm:$0xf]
    %v57 = vld [vmem:[#allocation2 + $0xc] sm:$0xf]
    %v58 = vld [vmem:[#allocation2 + $0x10] sm:$0xf]
    %v59 = vld [vmem:[#allocation2 + $0x14] sm:$0xf]
    %v60 = vld [vmem:[#allocation2 + $0x18] sm:$0xf]
    %v61 = vld [vmem:[#allocation2 + $0x1c] sm:$0xf]
    %v62 = vld [vmem:[#allocation2 + $0x20] sm:$0xf]
    %v63 = vld [vmem:[#allocation2 + $0x24] sm:$0xf]
    %v64 = vld [vmem:[%s1] sm:$0xf]
    %v65 = vld [vmem:[%s2] sm:$0xff]
    %v66 = vld [vmem:[#allocation5] sm:$0xf]
    %v67 = vld [vmem:[#allocation5 + $0x4] sm:$0xf]
    %v68 = vld [vmem:[#allocation5 + $0x8] sm:$0xf]
    %v69 = vld [vmem:[#allocation5 + $0xc] sm:$0xf]
    %v70 = vld [vmem:[#allocation5 + $0x10] sm:$0xf]
    %v71 = vld [vmem:[#allocation5 + $0x14] sm:$0xf]
    %v72 = vld [vmem:[#allocation5 + $0x18] sm:$0xf]
    %v73 = vld [vmem:[#allocation5 + $0x1c] sm:$0xf]
    %v74 = vld [vmem:[#allocation5 + $0x20] sm:$0xf]
    %v75 = vld [vmem:[#allocation5 + $0x24] sm:$0xf]
    %v76 = vld [vmem:[#allocation5 + $0x28] sm:$0xf]
    %v77 = vld [vmem:[#allocation5 + $0x2c] sm:$0xf]
    %v78 = vld [vmem:[#allocation5 + $0x30] sm:$0xf]
    %v79 = vld [vmem:[#allocation5 + $0x34] sm:$0xf]
    %v80 = vld [vmem:[#allocation5 + $0x38] sm:$0xf]
    %v81 = vld [vmem:[#allocation5 + $0x3c] sm:$0xf]
    %v82 = vld [vmem:[%s4] sm:$0x1]
    %s83 = scalar_lea.vmem [#allocation5], 64
    %v84 = vld [vmem:[%s83] sm:$0xf]
    %v85 = vld [vmem:[%s83 + $0x4] sm:$0xf]
    %v86 = vld [vmem:[%s83 + $0x8] sm:$0xf]
    %v87 = vld [vmem:[%s83 + $0xc] sm:$0xf]
    %v88 = vld [vmem:[%s83 + $0x10] sm:$0xf]
    %v89 = vld [vmem:[%s83 + $0x14] sm:$0xf]
    %v90 = vld [vmem:[%s83 + $0x18] sm:$0xf]
    %v91 = vld [vmem:[%s83 + $0x1c] sm:$0xf]
    %v92 = vld [vmem:[%s83 + $0x20] sm:$0xf]
    %v93 = vld [vmem:[%s83 + $0x24] sm:$0xf]
    %v94 = vld [vmem:[%s83 + $0x28] sm:$0xf]
    %v95 = vld [vmem:[%s83 + $0x2c] sm:$0xf]
    %v96 = vld [vmem:[%s83 + $0x30] sm:$0xf]
    %v97 = vld [vmem:[%s83 + $0x34] sm:$0xf]
    %v98 = vld [vmem:[%s83 + $0x38] sm:$0xf]
    %v99 = vld [vmem:[%s83 + $0x3c] sm:$0xf]
    %v100 = vld [vmem:[%s4 + $0x1] sm:$0x1]
    %s101 = scalar_lea.vmem [#allocation5], 128
    %v102 = vld [vmem:[%s101] sm:$0xf]
    %v103 = vld [vmem:[%s101 + $0x4] sm:$0xf]
    %v104 = vld [vmem:[%s101 + $0x8] sm:$0xf]
    %v105 = vld [vmem:[%s101 + $0xc] sm:$0xf]
    %v106 = vld [vmem:[%s101 + $0x10] sm:$0xf]
    %v107 = vld [vmem:[%s101 + $0x14] sm:$0xf]
    %v108 = vld [vmem:[%s101 + $0x18] sm:$0xf]
    %v109 = vld [vmem:[%s101 + $0x1c] sm:$0xf]
    %v110 = vld [vmem:[%s101 + $0x20] sm:$0xf]
    %v111 = vld [vmem:[%s101 + $0x24] sm:$0xf]
    %v112 = vld [vmem:[%s101 + $0x28] sm:$0xf]
    %v113 = vld [vmem:[%s101 + $0x2c] sm:$0xf]
    %v114 = vld [vmem:[%s101 + $0x30] sm:$0xf]
    %v115 = vld [vmem:[%s101 + $0x34] sm:$0xf]
    %v116 = vld [vmem:[%s101 + $0x38] sm:$0xf]
    %v117 = vld [vmem:[%s101 + $0x3c] sm:$0xf]
    %v118 = vld [vmem:[%s4 + $0x2] sm:$0x1]
    %s119 = scalar_lea.vmem [#allocation5], 192
    %v120 = vld [vmem:[%s119] sm:$0xf]
    %v121 = vld [vmem:[%s119 + $0x4] sm:$0xf]
    %v122 = vld [vmem:[%s119 + $0x8] sm:$0xf]
    %v123 = vld [vmem:[%s119 + $0xc] sm:$0xf]
    %v124 = vld [vmem:[%s119 + $0x10] sm:$0xf]
    %v125 = vld [vmem:[%s119 + $0x14] sm:$0xf]
    %v126 = vld [vmem:[%s119 + $0x18] sm:$0xf]
    %v127 = vld [vmem:[%s119 + $0x1c] sm:$0xf]
    %v128 = vld [vmem:[%s119 + $0x20] sm:$0xf]
    %v129 = vld [vmem:[%s119 + $0x24] sm:$0xf]
    %v130 = vld [vmem:[%s119 + $0x28] sm:$0xf]
    %v131 = vld [vmem:[%s119 + $0x2c] sm:$0xf]
    %v132 = vld [vmem:[%s119 + $0x30] sm:$0xf]
    %v133 = vld [vmem:[%s119 + $0x34] sm:$0xf]
    %v134 = vld [vmem:[%s119 + $0x38] sm:$0xf]
    %v135 = vld [vmem:[%s119 + $0x3c] sm:$0xf]
    %v136 = vld [vmem:[%s4 + $0x3] sm:$0x1]
    %s137 = scalar_lea.vmem [#allocation5], 256
    %v138 = vld [vmem:[%s137] sm:$0xf]
    %v139 = vld [vmem:[%s137 + $0x4] sm:$0xf]
    %v140 = vld [vmem:[%s137 + $0x8] sm:$0xf]
    %v141 = vld [vmem:[%s137 + $0xc] sm:$0xf]
    %v142 = vld [vmem:[%s137 + $0x10] sm:$0xf]
    %v143 = vld [vmem:[%s137 + $0x14] sm:$0xf]
    %v144 = vld [vmem:[%s137 + $0x18] sm:$0xf]
    %v145 = vld [vmem:[%s137 + $0x1c] sm:$0xf]
    %v146 = vld [vmem:[%s137 + $0x20] sm:$0xf]
    %v147 = vld [vmem:[%s137 + $0x24] sm:$0xf]
    %v148 = vld [vmem:[%s137 + $0x28] sm:$0xf]
    %v149 = vld [vmem:[%s137 + $0x2c] sm:$0xf]
    %v150 = vld [vmem:[%s137 + $0x30] sm:$0xf]
    %v151 = vld [vmem:[%s137 + $0x34] sm:$0xf]
    %v152 = vld [vmem:[%s137 + $0x38] sm:$0xf]
    %v153 = vld [vmem:[%s137 + $0x3c] sm:$0xf]
    %v154 = vld [vmem:[%s4 + $0x4] sm:$0x1]
    %s155 = scalar_lea.vmem [#allocation5], 320
    %v156 = vld [vmem:[%s155] sm:$0xf]
    %v157 = vld [vmem:[%s155 + $0x4] sm:$0xf]
    %v158 = vld [vmem:[%s155 + $0x8] sm:$0xf]
    %v159 = vld [vmem:[%s155 + $0xc] sm:$0xf]
    %v160 = vld [vmem:[%s155 + $0x10] sm:$0xf]
    %v161 = vld [vmem:[%s155 + $0x14] sm:$0xf]
    %v162 = vld [vmem:[%s155 + $0x18] sm:$0xf]
    %v163 = vld [vmem:[%s155 + $0x1c] sm:$0xf]
    %v164 = vld [vmem:[%s155 + $0x20] sm:$0xf]
    %v165 = vld [vmem:[%s155 + $0x24] sm:$0xf]
    %v166 = vld [vmem:[%s155 + $0x28] sm:$0xf]
    %v167 = vld [vmem:[%s155 + $0x2c] sm:$0xf]
    %v168 = vld [vmem:[%s155 + $0x30] sm:$0xf]
    %v169 = vld [vmem:[%s155 + $0x34] sm:$0xf]
    %v170 = vld [vmem:[%s155 + $0x38] sm:$0xf]
    %v171 = vld [vmem:[%s155 + $0x3c] sm:$0xf]
    %v172 = vld [vmem:[%s4 + $0x5] sm:$0x1]
    %v173 = vlaneseq
    %v174 = vshrl.u32 %v173, 7
    %v175 = vsub.s32 0, %v174
    %v176 = vrot.slane %v82, %v175
    %v187 = vunpack.c.l.b16 %v54
    %v188 = vunpack.c.l.b16 %v55
    %v189 = vunpack.c.l.b16 %v56
    %v190 = vunpack.c.l.b16 %v57
    %v191 = vunpack.c.l.b16 %v58
    %v192 = vunpack.c.l.b16 %v59
    %v193 = vunpack.c.l.b16 %v60
    %v194 = vunpack.c.l.b16 %v61
    %v195 = vunpack.c.l.b16 %v62
    %v196 = vunpack.c.l.b16 %v63
    %v197 = vpack.c.b16 %v188, %v187
    %v198 = vpack.c.b16 %v190, %v189
    %v199 = vpack.c.b16 %v192, %v191
    %v200 = vpack.c.b16 %v194, %v193
    %v201 = vpack.c.b16 %v196, %v195
    %v223 = vunpack.c.l.b16 %v66
    %v224 = vunpack.c.l.b16 %v67
    %v225 = vunpack.c.l.b16 %v68
    %v226 = vunpack.c.l.b16 %v69
    %v227 = vunpack.c.l.b16 %v70
    %v228 = vunpack.c.l.b16 %v71
    %v229 = vunpack.c.l.b16 %v72
    %v230 = vunpack.c.l.b16 %v73
    %v231 = vunpack.c.l.b16 %v74
    %v232 = vunpack.c.l.b16 %v75
    %v233 = vunpack.c.l.b16 %v76
    %v234 = vunpack.c.l.b16 %v77
    %v235 = vunpack.c.l.b16 %v78
    %v236 = vunpack.c.l.b16 %v79
    %v237 = vunpack.c.l.b16 %v80
    %v238 = vunpack.c.l.b16 %v81
    %v239 = vpack.c.b16 %v224, %v223
    %v240 = vpack.c.b16 %v226, %v225
    %v241 = vpack.c.b16 %v228, %v227
    %v242 = vpack.c.b16 %v230, %v229
    %v243 = vpack.c.b16 %v232, %v231
    %v244 = vpack.c.b16 %v234, %v233
    %v245 = vpack.c.b16 %v236, %v235
    %v246 = vpack.c.b16 %v238, %v237
    %255 = vmatprep.subr.bf16.mxu0 0
    %256 = vmatpush1.bf16.msra.mxu0 %v239
    %257 = vmatprep.subr.bf16.mxu0 0
    %258 = vmatpush1.bf16.msra.mxu0 %v240
    %259 = vmatprep.subr.bf16.mxu0 0
    %260 = vmatpush1.bf16.msra.mxu0 %v241
    %261 = vmatprep.subr.bf16.mxu0 0
    %262 = vmatpush1.bf16.msra.mxu0 %v242
    %263 = vmatprep.subr.bf16.mxu0 0
    %264 = vmatpush1.bf16.msra.mxu0 %v243
    %265 = vmatprep.subr.bf16.mxu0 0
    %266 = vmatpush1.bf16.msra.mxu0 %v244
    %267 = vmatprep.subr.bf16.mxu0 0
    %268 = vmatpush1.bf16.msra.mxu0 %v245
    %269 = vmatprep.subr.bf16.mxu0 0
    %270 = vmatpush1.bf16.msra.mxu0 %v246
    %271 = vmatprep.subr.bf16.mxu0 0
    %272 = vmatpush1.bf16.msra.mxu0 0
    %273 = vmatprep.subr.bf16.mxu0 0
    %274 = vmatpush1.bf16.msra.mxu0 0
    %275 = vmatprep.subr.bf16.mxu0 0
    %276 = vmatpush1.bf16.msra.mxu0 0
    %277 = vmatprep.subr.bf16.mxu0 0
    %278 = vmatpush1.bf16.msra.mxu0 0
    %279 = vmatprep.subr.bf16.mxu0 0
    %280 = vmatpush1.bf16.msra.mxu0 0
    %281 = vmatprep.subr.bf16.mxu0 0
    %282 = vmatpush1.bf16.msra.mxu0 0
    %283 = vmatprep.subr.bf16.mxu0 0
    %284 = vmatpush1.bf16.msra.mxu0 0
    %285 = vmatprep.subr.bf16.mxu0 0
    %286 = vmatpush1.bf16.msra.mxu0 0
    %287 = vmatprep.mubr.bf16.mxu0 0
    %288 = vmatmul.mubr.bf16.gmra.mrb[0].mxu0 %v197
    %v289 = vpop.f32.mrb[0].mxu0
    %v290 = vadd.f32 %v176, %v289
    %v291 = vpop.f32.mrb[0].mxu0
    %v292 = vpop.f32.mrb[0].mxu0
    %v293 = vadd.f32 %v176, %v292
    %v294 = vpop.f32.mrb[0].mxu0
    %295 = vmatprep.mubr.bf16.mxu0 0
    %296 = vmatmul.mubr.bf16.gmra.mrb[0].mxu0 %v198
    %v297 = vpop.f32.mrb[0].mxu0
    %v298 = vadd.f32 %v176, %v297
    %v299 = vpop.f32.mrb[0].mxu0
    %v300 = vpop.f32.mrb[0].mxu0
    %v301 = vadd.f32 %v176, %v300
    %v302 = vpop.f32.mrb[0].mxu0
    %303 = vmatprep.mubr.bf16.mxu0 0
    %304 = vmatmul.mubr.bf16.gmra.mrb[0].mxu0 %v199
    %v305 = vpop.f32.mrb[0].mxu0
    %v306 = vadd.f32 %v176, %v305
    %v307 = vpop.f32.mrb[0].mxu0
    %v308 = vpop.f32.mrb[0].mxu0
    %v309 = vadd.f32 %v176, %v308
    %v310 = vpop.f32.mrb[0].mxu0
    %311 = vmatprep.mubr.bf16.mxu0 0
    %312 = vmatmul.mubr.bf16.gmra.mrb[0].mxu0 %v200
    %v313 = vpop.f32.mrb[0].mxu0
    %v314 = vadd.f32 %v176, %v313
    %v315 = vpop.f32.mrb[0].mxu0
    %v316 = vpop.f32.mrb[0].mxu0
    %v317 = vadd.f32 %v176, %v316
    %v318 = vpop.f32.mrb[0].mxu0
    %319 = vmatprep.mubr.bf16.mxu0 0
    %320 = vmatmul.mubr.bf16.gmra.mrb[0].mxu0 %v201
    %v321 = vpop.f32.mrb[0].mxu0
    %v322 = vadd.f32 %v176, %v321
    %v323 = vpop.f32.mrb[0].mxu0
    %v324 = vpop.f32.mrb[0].mxu0
    %v325 = vadd.f32 %v176, %v324
    %v326 = vpop.f32.mrb[0].mxu0
    %327 = vdwg.mxu0
    %v328 = vpack.c.bf16 %v293, %v290
    %v329 = vpack.c.bf16 %v301, %v298
    %v330 = vpack.c.bf16 %v309, %v306
    %v331 = vpack.c.bf16 %v317, %v314
    %v332 = vpack.c.bf16 %v325, %v322
    %v333 = vlaneseq
    %v334 = vshrl.u32 %v333, 7
    %v335 = vsub.s32 0, %v334
    %v336 = vrot.slane %v100, %v335
    %v353 = vunpack.c.l.b16 %v84
    %v354 = vunpack.c.l.b16 %v85
    %v355 = vunpack.c.l.b16 %v86
    %v356 = vunpack.c.l.b16 %v87
    %v357 = vunpack.c.l.b16 %v88
    %v358 = vunpack.c.l.b16 %v89
    %v359 = vunpack.c.l.b16 %v90
    %v360 = vunpack.c.l.b16 %v91
    %v361 = vunpack.c.l.b16 %v92
    %v362 = vunpack.c.l.b16 %v93
    %v363 = vunpack.c.l.b16 %v94
    %v364 = vunpack.c.l.b16 %v95
    %v365 = vunpack.c.l.b16 %v96
    %v366 = vunpack.c.l.b16 %v97
    %v367 = vunpack.c.l.b16 %v98
    %v368 = vunpack.c.l.b16 %v99
    %v369 = vpack.c.b16 %v354, %v353
    %v370 = vpack.c.b16 %v356, %v355
    %v371 = vpack.c.b16 %v358, %v357
    %v372 = vpack.c.b16 %v360, %v359
    %v373 = vpack.c.b16 %v362, %v361
    %v374 = vpack.c.b16 %v364, %v363
    %v375 = vpack.c.b16 %v366, %v365
    %v376 = vpack.c.b16 %v368, %v367
    %385 = vmatprep.subr.bf16.mxu0 0
    %386 = vmatpush1.bf16.msra.mxu0 %v369
    %387 = vmatprep.subr.bf16.mxu0 0
    %388 = vmatpush1.bf16.msra.mxu0 %v370
    %389 = vmatprep.subr.bf16.mxu0 0
    %390 = vmatpush1.bf16.msra.mxu0 %v371
    %391 = vmatprep.subr.bf16.mxu0 0
    %392 = vmatpush1.bf16.msra.mxu0 %v372
    %393 = vmatprep.subr.bf16.mxu0 0
    %394 = vmatpush1.bf16.msra.mxu0 %v373
    %395 = vmatprep.subr.bf16.mxu0 0
    %396 = vmatpush1.bf16.msra.mxu0 %v374
    %397 = vmatprep.subr.bf16.mxu0 0
    %398 = vmatpush1.bf16.msra.mxu0 %v375
    %399 = vmatprep.subr.bf16.mxu0 0
    %400 = vmatpush1.bf16.msra.mxu0 %v376
    %401 = vmatprep.subr.bf16.mxu0 0
    %402 = vmatpush1.bf16.msra.mxu0 0
    %403 = vmatprep.subr.bf16.mxu0 0
    %404 = vmatpush1.bf16.msra.mxu0 0
    %405 = vmatprep.subr.bf16.mxu0 0
    %406 = vmatpush1.bf16.msra.mxu0 0
    %407 = vmatprep.subr.bf16.mxu0 0
    %408 = vmatpush1.bf16.msra.mxu0 0
    %409 = vmatprep.subr.bf16.mxu0 0
    %410 = vmatpush1.bf16.msra.mxu0 0
    %411 = vmatprep.subr.bf16.mxu0 0
    %412 = vmatpush1.bf16.msra.mxu0 0
    %413 = vmatprep.subr.bf16.mxu0 0
    %414 = vmatpush1.bf16.msra.mxu0 0
    %415 = vmatprep.subr.bf16.mxu0 0
    %416 = vmatpush1.bf16.msra.mxu0 0
    %417 = vmatprep.mubr.bf16.mxu0 0
    %418 = vmatmul.mubr.bf16.gmra.mrb[0].mxu0 %v328
    %v419 = vpop.f32.mrb[0].mxu0
    %v420 = vadd.f32 %v336, %v419
    %v421 = vpop.f32.mrb[0].mxu0
    %v422 = vpop.f32.mrb[0].mxu0
    %v423 = vadd.f32 %v336, %v422
    %v424 = vpop.f32.mrb[0].mxu0
    %425 = vmatprep.mubr.bf16.mxu0 0
    %426 = vmatmul.mubr.bf16.gmra.mrb[0].mxu0 %v329
    %v427 = vpop.f32.mrb[0].mxu0
    %v428 = vadd.f32 %v336, %v427
    %v429 = vpop.f32.mrb[0].mxu0
    %v430 = vpop.f32.mrb[0].mxu0
    %v431 = vadd.f32 %v336, %v430
    %v432 = vpop.f32.mrb[0].mxu0
    %433 = vmatprep.mubr.bf16.mxu0 0
    %434 = vmatmul.mubr.bf16.gmra.mrb[0].mxu0 %v330
    %v435 = vpop.f32.mrb[0].mxu0
    %v436 = vadd.f32 %v336, %v435
    %v437 = vpop.f32.mrb[0].mxu0
    %v438 = vpop.f32.mrb[0].mxu0
    %v439 = vadd.f32 %v336, %v438
    %v440 = vpop.f32.mrb[0].mxu0
    %441 = vmatprep.mubr.bf16.mxu0 0
    %442 = vmatmul.mubr.bf16.gmra.mrb[0].mxu0 %v331
    %v443 = vpop.f32.mrb[0].mxu0
    %v444 = vadd.f32 %v336, %v443
    %v445 = vpop.f32.mrb[0].mxu0
    %v446 = vpop.f32.mrb[0].mxu0
    %v447 = vadd.f32 %v336, %v446
    %v448 = vpop.f32.mrb[0].mxu0
    %449 = vmatprep.mubr.bf16.mxu0 0
    %450 = vmatmul.mubr.bf16.gmra.mrb[0].mxu0 %v332
    %v451 = vpop.f32.mrb[0].mxu0
    %v452 = vadd.f32 %v336, %v451
    %v453 = vpop.f32.mrb[0].mxu0
    %v454 = vpop.f32.mrb[0].mxu0
    %v455 = vadd.f32 %v336, %v454
    %v456 = vpop.f32.mrb[0].mxu0
    %457 = vdwg.mxu0
    %v458 = vmul.f32 %v420, %v420
    %v459 = vmul.f32 %v423, %v423
    %v460 = vmul.f32 %v428, %v428
    %v461 = vmul.f32 %v431, %v431
    %v462 = vmul.f32 %v436, %v436
    %v463 = vmul.f32 %v439, %v439
    %v464 = vmul.f32 %v444, %v444
    %v465 = vmul.f32 %v447, %v447
    %v466 = vmul.f32 %v452, %v452
    %v467 = vmul.f32 %v455, %v455
    %v468 = vmul.f32 %v420, %v458
    %v469 = vmul.f32 %v423, %v459
    %v470 = vmul.f32 %v428, %v460
    %v471 = vmul.f32 %v431, %v461
    %v472 = vmul.f32 %v436, %v462
    %v473 = vmul.f32 %v439, %v463
    %v474 = vmul.f32 %v444, %v464
    %v475 = vmul.f32 %v447, %v465
    %v476 = vmul.f32 %v452, %v466
    %v477 = vmul.f32 %v455, %v467
    %v478 = vmul.f32 %v468, 0.044715
    %v479 = vmul.f32 %v469, 0.044715
    %v480 = vmul.f32 %v470, 0.044715
    %v481 = vmul.f32 %v471, 0.044715
    %v482 = vmul.f32 %v472, 0.044715
    %v483 = vmul.f32 %v473, 0.044715
    %v484 = vmul.f32 %v474, 0.044715
    %v485 = vmul.f32 %v475, 0.044715
    %v486 = vmul.f32 %v476, 0.044715
    %v487 = vmul.f32 %v477, 0.044715
    %v488 = vadd.f32 %v420, %v478
    %v489 = vadd.f32 %v423, %v479
    %v490 = vadd.f32 %v428, %v480
    %v491 = vadd.f32 %v431, %v481
    %v492 = vadd.f32 %v436, %v482
    %v493 = vadd.f32 %v439, %v483
    %v494 = vadd.f32 %v444, %v484
    %v495 = vadd.f32 %v447, %v485
    %v496 = vadd.f32 %v452, %v486
    %v497 = vadd.f32 %v455, %v487
    %v498 = vmul.f32 %v488, 0.7978846
    %v499 = vmul.f32 %v489, 0.7978846
    %v500 = vmul.f32 %v490, 0.7978846
    %v501 = vmul.f32 %v491, 0.7978846
    %v502 = vmul.f32 %v492, 0.7978846
    %v503 = vmul.f32 %v493, 0.7978846
    %v504 = vmul.f32 %v494, 0.7978846
    %v505 = vmul.f32 %v495, 0.7978846
    %v506 = vmul.f32 %v496, 0.7978846
    %v507 = vmul.f32 %v497, 0.7978846
    %v508 = vtanh.pop %v498
    %v509 = vtanh.pop %v499
    %v510 = vtanh.pop %v500
    %v511 = vtanh.pop %v501
    %v512 = vtanh.pop %v502
    %v513 = vtanh.pop %v503
    %v514 = vtanh.pop %v504
    %v515 = vtanh.pop %v505
    %v516 = vtanh.pop %v506
    %v517 = vtanh.pop %v507
    %v518 = vadd.f32 %v508, 1.0
    %v519 = vadd.f32 %v509, 1.0
    %v520 = vadd.f32 %v510, 1.0
    %v521 = vadd.f32 %v511, 1.0
    %v522 = vadd.f32 %v512, 1.0
    %v523 = vadd.f32 %v513, 1.0
    %v524 = vadd.f32 %v514, 1.0
    %v525 = vadd.f32 %v515, 1.0
    %v526 = vadd.f32 %v516, 1.0
    %v527 = vadd.f32 %v517, 1.0
    %v528 = vmul.f32 %v518, 0.5
    %v529 = vmul.f32 %v519, 0.5
    %v530 = vmul.f32 %v520, 0.5
    %v531 = vmul.f32 %v521, 0.5
    %v532 = vmul.f32 %v522, 0.5
    %v533 = vmul.f32 %v523, 0.5
    %v534 = vmul.f32 %v524, 0.5
    %v535 = vmul.f32 %v525, 0.5
    %v536 = vmul.f32 %v526, 0.5
    %v537 = vmul.f32 %v527, 0.5
    %v538 = vmul.f32 %v420, %v528
    %v539 = vmul.f32 %v423, %v529
    %v540 = vmul.f32 %v428, %v530
    %v541 = vmul.f32 %v431, %v531
    %v542 = vmul.f32 %v436, %v532
    %v543 = vmul.f32 %v439, %v533
    %v544 = vmul.f32 %v444, %v534
    %v545 = vmul.f32 %v447, %v535
    %v546 = vmul.f32 %v452, %v536
    %v547 = vmul.f32 %v455, %v537
    %v548 = vpack.c.bf16 %v539, %v538
    %v549 = vpack.c.bf16 %v541, %v540
    %v550 = vpack.c.bf16 %v543, %v542
    %v551 = vpack.c.bf16 %v545, %v544
    %v552 = vpack.c.bf16 %v547, %v546
    %vm553 = vcmask 654336
    %v555 = vsel %vm553, %v64, 0
    %557 = vmatprep.subr.bf16.mxu0 0
    %558 = vmatpush1.bf16.msra.mxu0 %v548
    %559 = vmatprep.subr.bf16.mxu0 0
    %560 = vmatpush1.bf16.msra.mxu0 %v549
    %561 = vmatprep.subr.bf16.mxu0 0
    %562 = vmatpush1.bf16.msra.mxu0 %v550
    %563 = vmatprep.subr.bf16.mxu0 0
    %564 = vmatpush1.bf16.msra.mxu0 %v551
    %565 = vmatprep.subr.bf16.mxu0 0
    %566 = vmatpush1.bf16.msra.mxu0 %v552
    %567 = vmatprep.subr.bf16.mxu0 0
    %568 = vmatpush1.bf16.msra.mxu0 0
    %569 = vmatprep.subr.bf16.mxu0 0
    %570 = vmatpush1.bf16.msra.mxu0 0
    %571 = vmatprep.subr.bf16.mxu0 0
    %572 = vmatpush1.bf16.msra.mxu0 0
    %573 = vmatprep.subr.bf16.mxu0 0
    %574 = vmatpush1.bf16.msra.mxu0 0
    %575 = vmatprep.subr.bf16.mxu0 0
    %576 = vmatpush1.bf16.msra.mxu0 0
    %577 = vmatprep.subr.bf16.mxu0 0
    %578 = vmatpush1.bf16.msra.mxu0 0
    %579 = vmatprep.subr.bf16.mxu0 0
    %580 = vmatpush1.bf16.msra.mxu0 0
    %581 = vmatprep.subr.bf16.mxu0 0
    %582 = vmatpush1.bf16.msra.mxu0 0
    %583 = vmatprep.subr.bf16.mxu0 0
    %584 = vmatpush1.bf16.msra.mxu0 0
    %585 = vmatprep.subr.bf16.mxu0 0
    %586 = vmatpush1.bf16.msra.mxu0 0
    %587 = vmatprep.subr.bf16.mxu0 0
    %588 = vmatpush1.bf16.msra.mxu0 0
    %589 = vmatprep.mubr.bf16.mxu0 0
    %590 = vmatmul.mubr.bf16.gmra.mrb[0].mxu0 %v555
    %v591 = vpop.f32.mrb[0].mxu0
    %v592 = vadd.f32 0.0, %v591
    %v593 = vpop.f32.mrb[0].mxu0
    %v594 = vpop.f32.mrb[0].mxu0
    %v595 = vpop.f32.mrb[0].mxu0
    %596 = vdwg.mxu0
    %598 = vset.pattern.permute.xlu0 0
    %599 = vperm.xlu0 %598, %v65
    %v600 = vpop.permute.xlu0 %599
    %v602 = vmul.f32 %v592, %v600
    %v603 = vpack.c.bf16 %v602, %v602
    %v604 = vlaneseq
    %v605 = vshrl.u32 %v604, 7
    %v606 = vsub.s32 0, %v605
    %v607 = vrot.slane %v118, %v606
    %v624 = vunpack.c.l.b16 %v102
    %v625 = vunpack.c.l.b16 %v103
    %v626 = vunpack.c.l.b16 %v104
    %v627 = vunpack.c.l.b16 %v105
    %v628 = vunpack.c.l.b16 %v106
    %v629 = vunpack.c.l.b16 %v107
    %v630 = vunpack.c.l.b16 %v108
    %v631 = vunpack.c.l.b16 %v109
    %v632 = vunpack.c.l.b16 %v110
    %v633 = vunpack.c.l.b16 %v111
    %v634 = vunpack.c.l.b16 %v112
    %v635 = vunpack.c.l.b16 %v113
    %v636 = vunpack.c.l.b16 %v114
    %v637 = vunpack.c.l.b16 %v115
    %v638 = vunpack.c.l.b16 %v116
    %v639 = vunpack.c.l.b16 %v117
    %v640 = vpack.c.b16 %v625, %v624
    %v641 = vpack.c.b16 %v627, %v626
    %v642 = vpack.c.b16 %v629, %v628
    %v643 = vpack.c.b16 %v631, %v630
    %v644 = vpack.c.b16 %v633, %v632
    %v645 = vpack.c.b16 %v635, %v634
    %v646 = vpack.c.b16 %v637, %v636
    %v647 = vpack.c.b16 %v639, %v638
    %656 = vmatprep.subr.bf16.mxu0 0
    %657 = vmatpush1.bf16.msra.mxu0 %v640
    %658 = vmatprep.subr.bf16.mxu0 0
    %659 = vmatpush1.bf16.msra.mxu0 %v641
    %660 = vmatprep.subr.bf16.mxu0 0
    %661 = vmatpush1.bf16.msra.mxu0 %v642
    %662 = vmatprep.subr.bf16.mxu0 0
    %663 = vmatpush1.bf16.msra.mxu0 %v643
    %664 = vmatprep.subr.bf16.mxu0 0
    %665 = vmatpush1.bf16.msra.mxu0 %v644
    %666 = vmatprep.subr.bf16.mxu0 0
    %667 = vmatpush1.bf16.msra.mxu0 %v645
    %668 = vmatprep.subr.bf16.mxu0 0
    %669 = vmatpush1.bf16.msra.mxu0 %v646
    %670 = vmatprep.subr.bf16.mxu0 0
    %671 = vmatpush1.bf16.msra.mxu0 %v647
    %672 = vmatprep.subr.bf16.mxu0 0
    %673 = vmatpush1.bf16.msra.mxu0 0
    %674 = vmatprep.subr.bf16.mxu0 0
    %675 = vmatpush1.bf16.msra.mxu0 0
    %676 = vmatprep.subr.bf16.mxu0 0
    %677 = vmatpush1.bf16.msra.mxu0 0
    %678 = vmatprep.subr.bf16.mxu0 0
    %679 = vmatpush1.bf16.msra.mxu0 0
    %680 = vmatprep.subr.bf16.mxu0 0
    %681 = vmatpush1.bf16.msra.mxu0 0
    %682 = vmatprep.subr.bf16.mxu0 0
    %683 = vmatpush1.bf16.msra.mxu0 0
    %684 = vmatprep.subr.bf16.mxu0 0
    %685 = vmatpush1.bf16.msra.mxu0 0
    %686 = vmatprep.subr.bf16.mxu0 0
    %687 = vmatpush1.bf16.msra.mxu0 0
    %688 = vmatprep.mubr.bf16.mxu0 0
    %689 = vmatmul.mubr.bf16.gmra.mrb[0].mxu0 %v603
    %v690 = vpop.f32.mrb[0].mxu0
    %v691 = vadd.f32 %v607, %v690
    %v692 = vpop.f32.mrb[0].mxu0
    %v693 = vpop.f32.mrb[0].mxu0
    %v694 = vpop.f32.mrb[0].mxu0
    %695 = vdwg.mxu0
    %v696 = vmul.f32 %v691, %v691
    %v697 = vmul.f32 %v691, %v696
    %v698 = vmul.f32 %v697, 0.044715
    %v699 = vadd.f32 %v691, %v698
    %v700 = vmul.f32 %v699, 0.7978846
    %v701 = vtanh.pop %v700
    %v702 = vadd.f32 %v701, 1.0
    %v703 = vmul.f32 %v702, 0.5
    %v704 = vmul.f32 %v691, %v703
    %v705 = vpack.c.bf16 %v704, %v704
    %v706 = vlaneseq
    %v707 = vshrl.u32 %v706, 7
    %v708 = vsub.s32 0, %v707
    %v709 = vrot.slane %v136, %v708
    %v726 = vunpack.c.l.b16 %v120
    %v727 = vunpack.c.l.b16 %v121
    %v728 = vunpack.c.l.b16 %v122
    %v729 = vunpack.c.l.b16 %v123
    %v730 = vunpack.c.l.b16 %v124
    %v731 = vunpack.c.l.b16 %v125
    %v732 = vunpack.c.l.b16 %v126
    %v733 = vunpack.c.l.b16 %v127
    %v734 = vunpack.c.l.b16 %v128
    %v735 = vunpack.c.l.b16 %v129
    %v736 = vunpack.c.l.b16 %v130
    %v737 = vunpack.c.l.b16 %v131
    %v738 = vunpack.c.l.b16 %v132
    %v739 = vunpack.c.l.b16 %v133
    %v740 = vunpack.c.l.b16 %v134
    %v741 = vunpack.c.l.b16 %v135
    %v742 = vpack.c.b16 %v727, %v726
    %v743 = vpack.c.b16 %v729, %v728
    %v744 = vpack.c.b16 %v731, %v730
    %v745 = vpack.c.b16 %v733, %v732
    %v746 = vpack.c.b16 %v735, %v734
    %v747 = vpack.c.b16 %v737, %v736
    %v748 = vpack.c.b16 %v739, %v738
    %v749 = vpack.c.b16 %v741, %v740
    %758 = vmatprep.subr.bf16.mxu0 0
    %759 = vmatpush1.bf16.msra.mxu0 %v742
    %760 = vmatprep.subr.bf16.mxu0 0
    %761 = vmatpush1.bf16.msra.mxu0 %v743
    %762 = vmatprep.subr.bf16.mxu0 0
    %763 = vmatpush1.bf16.msra.mxu0 %v744
    %764 = vmatprep.subr.bf16.mxu0 0
    %765 = vmatpush1.bf16.msra.mxu0 %v745
    %766 = vmatprep.subr.bf16.mxu0 0
    %767 = vmatpush1.bf16.msra.mxu0 %v746
    %768 = vmatprep.subr.bf16.mxu0 0
    %769 = vmatpush1.bf16.msra.mxu0 %v747
    %770 = vmatprep.subr.bf16.mxu0 0
    %771 = vmatpush1.bf16.msra.mxu0 %v748
    %772 = vmatprep.subr.bf16.mxu0 0
    %773 = vmatpush1.bf16.msra.mxu0 %v749
    %774 = vmatprep.subr.bf16.mxu0 0
    %775 = vmatpush1.bf16.msra.mxu0 0
    %776 = vmatprep.subr.bf16.mxu0 0
    %777 = vmatpush1.bf16.msra.mxu0 0
    %778 = vmatprep.subr.bf16.mxu0 0
    %779 = vmatpush1.bf16.msra.mxu0 0
    %780 = vmatprep.subr.bf16.mxu0 0
    %781 = vmatpush1.bf16.msra.mxu0 0
    %782 = vmatprep.subr.bf16.mxu0 0
    %783 = vmatpush1.bf16.msra.mxu0 0
    %784 = vmatprep.subr.bf16.mxu0 0
    %785 = vmatpush1.bf16.msra.mxu0 0
    %786 = vmatprep.subr.bf16.mxu0 0
    %787 = vmatpush1.bf16.msra.mxu0 0
    %788 = vmatprep.subr.bf16.mxu0 0
    %789 = vmatpush1.bf16.msra.mxu0 0
    %790 = vmatprep.mubr.bf16.mxu0 0
    %791 = vmatmul.mubr.bf16.gmra.mrb[0].mxu0 %v705
    %v792 = vpop.f32.mrb[0].mxu0
    %v793 = vadd.f32 %v709, %v792
    %v794 = vpop.f32.mrb[0].mxu0
    %v795 = vpop.f32.mrb[0].mxu0
    %v796 = vpop.f32.mrb[0].mxu0
    %797 = vdwg.mxu0
    %v798 = vlaneseq
    %v799 = vshrl.u32 %v798, 7
    %v800 = vsub.s32 0, %v799
    %v801 = vrot.slane %v154, %v800
    %v818 = vunpack.c.l.b16 %v138
    %v819 = vunpack.c.l.b16 %v139
    %v820 = vunpack.c.l.b16 %v140
    %v821 = vunpack.c.l.b16 %v141
    %v822 = vunpack.c.l.b16 %v142
    %v823 = vunpack.c.l.b16 %v143
    %v824 = vunpack.c.l.b16 %v144
    %v825 = vunpack.c.l.b16 %v145
    %v826 = vunpack.c.l.b16 %v146
    %v827 = vunpack.c.l.b16 %v147
    %v828 = vunpack.c.l.b16 %v148
    %v829 = vunpack.c.l.b16 %v149
    %v830 = vunpack.c.l.b16 %v150
    %v831 = vunpack.c.l.b16 %v151
    %v832 = vunpack.c.l.b16 %v152
    %v833 = vunpack.c.l.b16 %v153
    %v834 = vpack.c.b16 %v819, %v818
    %v835 = vpack.c.b16 %v821, %v820
    %v836 = vpack.c.b16 %v823, %v822
    %v837 = vpack.c.b16 %v825, %v824
    %v838 = vpack.c.b16 %v827, %v826
    %v839 = vpack.c.b16 %v829, %v828
    %v840 = vpack.c.b16 %v831, %v830
    %v841 = vpack.c.b16 %v833, %v832
    %850 = vmatprep.subr.bf16.mxu0 0
    %851 = vmatpush1.bf16.msra.mxu0 %v834
    %852 = vmatprep.subr.bf16.mxu0 0
    %853 = vmatpush1.bf16.msra.mxu0 %v835
    %854 = vmatprep.subr.bf16.mxu0 0
    %855 = vmatpush1.bf16.msra.mxu0 %v836
    %856 = vmatprep.subr.bf16.mxu0 0
    %857 = vmatpush1.bf16.msra.mxu0 %v837
    %858 = vmatprep.subr.bf16.mxu0 0
    %859 = vmatpush1.bf16.msra.mxu0 %v838
    %860 = vmatprep.subr.bf16.mxu0 0
    %861 = vmatpush1.bf16.msra.mxu0 %v839
    %862 = vmatprep.subr.bf16.mxu0 0
    %863 = vmatpush1.bf16.msra.mxu0 %v840
    %864 = vmatprep.subr.bf16.mxu0 0
    %865 = vmatpush1.bf16.msra.mxu0 %v841
    %866 = vmatprep.subr.bf16.mxu0 0
    %867 = vmatpush1.bf16.msra.mxu0 0
    %868 = vmatprep.subr.bf16.mxu0 0
    %869 = vmatpush1.bf16.msra.mxu0 0
    %870 = vmatprep.subr.bf16.mxu0 0
    %871 = vmatpush1.bf16.msra.mxu0 0
    %872 = vmatprep.subr.bf16.mxu0 0
    %873 = vmatpush1.bf16.msra.mxu0 0
    %874 = vmatprep.subr.bf16.mxu0 0
    %875 = vmatpush1.bf16.msra.mxu0 0
    %876 = vmatprep.subr.bf16.mxu0 0
    %877 = vmatpush1.bf16.msra.mxu0 0
    %878 = vmatprep.subr.bf16.mxu0 0
    %879 = vmatpush1.bf16.msra.mxu0 0
    %880 = vmatprep.subr.bf16.mxu0 0
    %881 = vmatpush1.bf16.msra.mxu0 0
    %882 = vmatprep.mubr.bf16.mxu0 0
    %883 = vmatmul.mubr.bf16.gmra.mrb[0].mxu0 %v548
    %v884 = vpop.f32.mrb[0].mxu0
    %v885 = vadd.f32 %v801, %v884
    %v886 = vpop.f32.mrb[0].mxu0
    %v887 = vpop.f32.mrb[0].mxu0
    %v888 = vadd.f32 %v801, %v887
    %v889 = vpop.f32.mrb[0].mxu0
    %890 = vmatprep.mubr.bf16.mxu0 0
    %891 = vmatmul.mubr.bf16.gmra.mrb[0].mxu0 %v549
    %v892 = vpop.f32.mrb[0].mxu0
    %v893 = vadd.f32 %v801, %v892
    %v894 = vpop.f32.mrb[0].mxu0
    %v895 = vpop.f32.mrb[0].mxu0
    %v896 = vadd.f32 %v801, %v895
    %v897 = vpop.f32.mrb[0].mxu0
    %898 = vmatprep.mubr.bf16.mxu0 0
    %899 = vmatmul.mubr.bf16.gmra.mrb[0].mxu0 %v550
    %v900 = vpop.f32.mrb[0].mxu0
    %v901 = vadd.f32 %v801, %v900
    %v902 = vpop.f32.mrb[0].mxu0
    %v903 = vpop.f32.mrb[0].mxu0
    %v904 = vadd.f32 %v801, %v903
    %v905 = vpop.f32.mrb[0].mxu0
    %906 = vmatprep.mubr.bf16.mxu0 0
    %907 = vmatmul.mubr.bf16.gmra.mrb[0].mxu0 %v551
    %v908 = vpop.f32.mrb[0].mxu0
    %v909 = vadd.f32 %v801, %v908
    %v910 = vpop.f32.mrb[0].mxu0
    %v911 = vpop.f32.mrb[0].mxu0
    %v912 = vadd.f32 %v801, %v911
    %v913 = vpop.f32.mrb[0].mxu0
    %914 = vmatprep.mubr.bf16.mxu0 0
    %915 = vmatmul.mubr.bf16.gmra.mrb[0].mxu0 %v552
    %v916 = vpop.f32.mrb[0].mxu0
    %v917 = vadd.f32 %v801, %v916
    %v918 = vpop.f32.mrb[0].mxu0
    %v919 = vpop.f32.mrb[0].mxu0
    %v920 = vadd.f32 %v801, %v919
    %v921 = vpop.f32.mrb[0].mxu0
    %922 = vdwg.mxu0
    %v923 = vmul.f32 %v885, %v885
    %v924 = vmul.f32 %v888, %v888
    %v925 = vmul.f32 %v893, %v893
    %v926 = vmul.f32 %v896, %v896
    %v927 = vmul.f32 %v901, %v901
    %v928 = vmul.f32 %v904, %v904
    %v929 = vmul.f32 %v909, %v909
    %v930 = vmul.f32 %v912, %v912
    %v931 = vmul.f32 %v917, %v917
    %v932 = vmul.f32 %v920, %v920
    %v933 = vmul.f32 %v885, %v923
    %v934 = vmul.f32 %v888, %v924
    %v935 = vmul.f32 %v893, %v925
    %v936 = vmul.f32 %v896, %v926
    %v937 = vmul.f32 %v901, %v927
    %v938 = vmul.f32 %v904, %v928
    %v939 = vmul.f32 %v909, %v929
    %v940 = vmul.f32 %v912, %v930
    %v941 = vmul.f32 %v917, %v931
    %v942 = vmul.f32 %v920, %v932
    %v943 = vmul.f32 %v933, 0.044715
    %v944 = vmul.f32 %v934, 0.044715
    %v945 = vmul.f32 %v935, 0.044715
    %v946 = vmul.f32 %v936, 0.044715
    %v947 = vmul.f32 %v937, 0.044715
    %v948 = vmul.f32 %v938, 0.044715
    %v949 = vmul.f32 %v939, 0.044715
    %v950 = vmul.f32 %v940, 0.044715
    %v951 = vmul.f32 %v941, 0.044715
    %v952 = vmul.f32 %v942, 0.044715
    %v953 = vadd.f32 %v885, %v943
    %v954 = vadd.f32 %v888, %v944
    %v955 = vadd.f32 %v893, %v945
    %v956 = vadd.f32 %v896, %v946
    %v957 = vadd.f32 %v901, %v947
    %v958 = vadd.f32 %v904, %v948
    %v959 = vadd.f32 %v909, %v949
    %v960 = vadd.f32 %v912, %v950
    %v961 = vadd.f32 %v917, %v951
    %v962 = vadd.f32 %v920, %v952
    %v963 = vmul.f32 %v953, 0.7978846
    %v964 = vmul.f32 %v954, 0.7978846
    %v965 = vmul.f32 %v955, 0.7978846
    %v966 = vmul.f32 %v956, 0.7978846
    %v967 = vmul.f32 %v957, 0.7978846
    %v968 = vmul.f32 %v958, 0.7978846
    %v969 = vmul.f32 %v959, 0.7978846
    %v970 = vmul.f32 %v960, 0.7978846
    %v971 = vmul.f32 %v961, 0.7978846
    %v972 = vmul.f32 %v962, 0.7978846
    %v973 = vtanh.pop %v963
    %v974 = vtanh.pop %v964
    %v975 = vtanh.pop %v965
    %v976 = vtanh.pop %v966
    %v977 = vtanh.pop %v967
    %v978 = vtanh.pop %v968
    %v979 = vtanh.pop %v969
    %v980 = vtanh.pop %v970
    %v981 = vtanh.pop %v971
    %v982 = vtanh.pop %v972
    %v983 = vadd.f32 %v973, 1.0
    %v984 = vadd.f32 %v974, 1.0
    %v985 = vadd.f32 %v975, 1.0
    %v986 = vadd.f32 %v976, 1.0
    %v987 = vadd.f32 %v977, 1.0
    %v988 = vadd.f32 %v978, 1.0
    %v989 = vadd.f32 %v979, 1.0
    %v990 = vadd.f32 %v980, 1.0
    %v991 = vadd.f32 %v981, 1.0
    %v992 = vadd.f32 %v982, 1.0
    %v993 = vmul.f32 %v983, 0.5
    %v994 = vmul.f32 %v984, 0.5
    %v995 = vmul.f32 %v985, 0.5
    %v996 = vmul.f32 %v986, 0.5
    %v997 = vmul.f32 %v987, 0.5
    %v998 = vmul.f32 %v988, 0.5
    %v999 = vmul.f32 %v989, 0.5
    %v1000 = vmul.f32 %v990, 0.5
    %v1001 = vmul.f32 %v991, 0.5
    %v1002 = vmul.f32 %v992, 0.5
    %v1003 = vmul.f32 %v885, %v993
    %v1004 = vmul.f32 %v888, %v994
    %v1005 = vmul.f32 %v893, %v995
    %v1006 = vmul.f32 %v896, %v996
    %v1007 = vmul.f32 %v901, %v997
    %v1008 = vmul.f32 %v904, %v998
    %v1009 = vmul.f32 %v909, %v999
    %v1010 = vmul.f32 %v912, %v1000
    %v1011 = vmul.f32 %v917, %v1001
    %v1012 = vmul.f32 %v920, %v1002
    %v1013 = vpack.c.bf16 %v1004, %v1003
    %v1014 = vpack.c.bf16 %v1006, %v1005
    %v1015 = vpack.c.bf16 %v1008, %v1007
    %v1016 = vpack.c.bf16 %v1010, %v1009
    %v1017 = vpack.c.bf16 %v1012, %v1011
    %v1018 = vlaneseq
    %v1019 = vshrl.u32 %v1018, 7
    %v1020 = vsub.s32 0, %v1019
    %v1021 = vrot.slane %v172, %v1020
    %v1038 = vunpack.c.l.b16 %v156
    %v1039 = vunpack.c.l.b16 %v157
    %v1040 = vunpack.c.l.b16 %v158
    %v1041 = vunpack.c.l.b16 %v159
    %v1042 = vunpack.c.l.b16 %v160
    %v1043 = vunpack.c.l.b16 %v161
    %v1044 = vunpack.c.l.b16 %v162
    %v1045 = vunpack.c.l.b16 %v163
    %v1046 = vunpack.c.l.b16 %v164
    %v1047 = vunpack.c.l.b16 %v165
    %v1048 = vunpack.c.l.b16 %v166
    %v1049 = vunpack.c.l.b16 %v167
    %v1050 = vunpack.c.l.b16 %v168
    %v1051 = vunpack.c.l.b16 %v169
    %v1052 = vunpack.c.l.b16 %v170
    %v1053 = vunpack.c.l.b16 %v171
    %v1054 = vpack.c.b16 %v1039, %v1038
    %v1055 = vpack.c.b16 %v1041, %v1040
    %v1056 = vpack.c.b16 %v1043, %v1042
    %v1057 = vpack.c.b16 %v1045, %v1044
    %v1058 = vpack.c.b16 %v1047, %v1046
    %v1059 = vpack.c.b16 %v1049, %v1048
    %v1060 = vpack.c.b16 %v1051, %v1050
    %v1061 = vpack.c.b16 %v1053, %v1052
    %1070 = vmatprep.subr.bf16.mxu0 0
    %1071 = vmatpush1.bf16.msra.mxu0 %v1054
    %1072 = vmatprep.subr.bf16.mxu0 0
    %1073 = vmatpush1.bf16.msra.mxu0 %v1055
    %1074 = vmatprep.subr.bf16.mxu0 0
    %1075 = vmatpush1.bf16.msra.mxu0 %v1056
    %1076 = vmatprep.subr.bf16.mxu0 0
    %1077 = vmatpush1.bf16.msra.mxu0 %v1057
    %1078 = vmatprep.subr.bf16.mxu0 0
    %1079 = vmatpush1.bf16.msra.mxu0 %v1058
    %1080 = vmatprep.subr.bf16.mxu0 0
    %1081 = vmatpush1.bf16.msra.mxu0 %v1059
    %1082 = vmatprep.subr.bf16.mxu0 0
    %1083 = vmatpush1.bf16.msra.mxu0 %v1060
    %1084 = vmatprep.subr.bf16.mxu0 0
    %1085 = vmatpush1.bf16.msra.mxu0 %v1061
    %1086 = vmatprep.subr.bf16.mxu0 0
    %1087 = vmatpush1.bf16.msra.mxu0 0
    %1088 = vmatprep.subr.bf16.mxu0 0
    %1089 = vmatpush1.bf16.msra.mxu0 0
    %1090 = vmatprep.subr.bf16.mxu0 0
    %1091 = vmatpush1.bf16.msra.mxu0 0
    %1092 = vmatprep.subr.bf16.mxu0 0
    %1093 = vmatpush1.bf16.msra.mxu0 0
    %1094 = vmatprep.subr.bf16.mxu0 0
    %1095 = vmatpush1.bf16.msra.mxu0 0
    %1096 = vmatprep.subr.bf16.mxu0 0
    %1097 = vmatpush1.bf16.msra.mxu0 0
    %1098 = vmatprep.subr.bf16.mxu0 0
    %1099 = vmatpush1.bf16.msra.mxu0 0
    %1100 = vmatprep.subr.bf16.mxu0 0
    %1101 = vmatpush1.bf16.msra.mxu0 0
    %1102 = vmatprep.mubr.bf16.mxu0 0
    %1103 = vmatmul.mubr.bf16.gmra.mrb[0].mxu0 %v1013
    %v1104 = vpop.f32.mrb[0].mxu0
    %v1105 = vadd.f32 %v1021, %v1104
    %v1106 = vpop.f32.mrb[0].mxu0
    %v1107 = vpop.f32.mrb[0].mxu0
    %v1108 = vadd.f32 %v1021, %v1107
    %v1109 = vpop.f32.mrb[0].mxu0
    %1110 = vmatprep.mubr.bf16.mxu0 0
    %1111 = vmatmul.mubr.bf16.gmra.mrb[0].mxu0 %v1014
    %v1112 = vpop.f32.mrb[0].mxu0
    %v1113 = vadd.f32 %v1021, %v1112
    %v1114 = vpop.f32.mrb[0].mxu0
    %v1115 = vpop.f32.mrb[0].mxu0
    %v1116 = vadd.f32 %v1021, %v1115
    %v1117 = vpop.f32.mrb[0].mxu0
    %1118 = vmatprep.mubr.bf16.mxu0 0
    %1119 = vmatmul.mubr.bf16.gmra.mrb[0].mxu0 %v1015
    %v1120 = vpop.f32.mrb[0].mxu0
    %v1121 = vadd.f32 %v1021, %v1120
    %v1122 = vpop.f32.mrb[0].mxu0
    %v1123 = vpop.f32.mrb[0].mxu0
    %v1124 = vadd.f32 %v1021, %v1123
    %v1125 = vpop.f32.mrb[0].mxu0
    %1126 = vmatprep.mubr.bf16.mxu0 0
    %1127 = vmatmul.mubr.bf16.gmra.mrb[0].mxu0 %v1016
    %v1128 = vpop.f32.mrb[0].mxu0
    %v1129 = vadd.f32 %v1021, %v1128
    %v1130 = vpop.f32.mrb[0].mxu0
    %v1131 = vpop.f32.mrb[0].mxu0
    %v1132 = vadd.f32 %v1021, %v1131
    %v1133 = vpop.f32.mrb[0].mxu0
    %1134 = vmatprep.mubr.bf16.mxu0 0
    %1135 = vmatmul.mubr.bf16.gmra.mrb[0].mxu0 %v1017
    %v1136 = vpop.f32.mrb[0].mxu0
    %v1137 = vadd.f32 %v1021, %v1136
    %v1138 = vpop.f32.mrb[0].mxu0
    %v1139 = vpop.f32.mrb[0].mxu0
    %v1140 = vadd.f32 %v1021, %v1139
    %v1141 = vpop.f32.mrb[0].mxu0
    %1142 = vdwg.mxu0
    %v1148 = vunpack.c.l.b16 %v548
    %v1149 = vunpack.c.h.b16 %v548
    %v1150 = vunpack.c.l.b16 %v549
    %v1151 = vunpack.c.h.b16 %v549
    %v1152 = vunpack.c.l.b16 %v550
    %v1153 = vunpack.c.h.b16 %v550
    %v1154 = vunpack.c.l.b16 %v551
    %v1155 = vunpack.c.h.b16 %v551
    %v1156 = vunpack.c.l.b16 %v552
    %v1157 = vunpack.c.h.b16 %v552
    %v1158 = vpack.c.b16 %v1148, %v1148
    %v1159 = vpack.c.b16 %v1149, %v1149
    %v1160 = vpack.c.b16 %v1150, %v1150
    %v1161 = vpack.c.b16 %v1151, %v1151
    %v1162 = vpack.c.b16 %v1152, %v1152
    %v1163 = vpack.c.b16 %v1153, %v1153
    %v1164 = vpack.c.b16 %v1154, %v1154
    %v1165 = vpack.c.b16 %v1155, %v1155
    %v1166 = vpack.c.b16 %v1156, %v1156
    %v1167 = vpack.c.b16 %v1157, %v1157
    %1178 = vst [vmem:[#allocation7] sm:$0xf] %v1158
    %1179 = vst [vmem:[#allocation7 + $0x4] sm:$0xf] %v1159
    %1180 = vst [vmem:[#allocation7 + $0x8] sm:$0xf] %v1160
    %1181 = vst [vmem:[#allocation7 + $0xc] sm:$0xf] %v1161
    %1182 = vst [vmem:[#allocation7 + $0x10] sm:$0xf] %v1162
    %1183 = vst [vmem:[#allocation7 + $0x14] sm:$0xf] %v1163
    %1184 = vst [vmem:[#allocation7 + $0x18] sm:$0xf] %v1164
    %1185 = vst [vmem:[#allocation7 + $0x1c] sm:$0xf] %v1165
    %1186 = vst [vmem:[#allocation7 + $0x20] sm:$0xf] %v1166
    %1187 = vst [vmem:[#allocation7 + $0x24] sm:$0xf] %v1167
    %1188 = vst [vmem:[#allocation8] sm:$0xff] %v793
    %v1189 = vpack.c.bf16 %v1108, %v1105
    %v1190 = vpack.c.bf16 %v1116, %v1113
    %v1191 = vpack.c.bf16 %v1124, %v1121
    %v1192 = vpack.c.bf16 %v1132, %v1129
    %v1193 = vpack.c.bf16 %v1140, %v1137
    %v1199 = vunpack.c.l.b16 %v1189
    %v1200 = vunpack.c.h.b16 %v1189
    %v1201 = vunpack.c.l.b16 %v1190
    %v1202 = vunpack.c.h.b16 %v1190
    %v1203 = vunpack.c.l.b16 %v1191
    %v1204 = vunpack.c.h.b16 %v1191
    %v1205 = vunpack.c.l.b16 %v1192
    %v1206 = vunpack.c.h.b16 %v1192
    %v1207 = vunpack.c.l.b16 %v1193
    %v1208 = vunpack.c.h.b16 %v1193
    %v1209 = vpack.c.b16 %v1199, %v1199
    %v1210 = vpack.c.b16 %v1200, %v1200
    %v1211 = vpack.c.b16 %v1201, %v1201
    %v1212 = vpack.c.b16 %v1202, %v1202
    %v1213 = vpack.c.b16 %v1203, %v1203
    %v1214 = vpack.c.b16 %v1204, %v1204
    %v1215 = vpack.c.b16 %v1205, %v1205
    %v1216 = vpack.c.b16 %v1206, %v1206
    %v1217 = vpack.c.b16 %v1207, %v1207
    %v1218 = vpack.c.b16 %v1208, %v1208
    %1229 = vst [vmem:[#allocation10] sm:$0xf] %v1209
    %1230 = vst [vmem:[#allocation10 + $0x4] sm:$0xf] %v1210
    %1231 = vst [vmem:[#allocation10 + $0x8] sm:$0xf] %v1211
    %1232 = vst [vmem:[#allocation10 + $0xc] sm:$0xf] %v1212
    %1233 = vst [vmem:[#allocation10 + $0x10] sm:$0xf] %v1213
    %1234 = vst [vmem:[#allocation10 + $0x14] sm:$0xf] %v1214
    %1235 = vst [vmem:[#allocation10 + $0x18] sm:$0xf] %v1215
    %1236 = vst [vmem:[#allocation10 + $0x1c] sm:$0xf] %v1216
    %1237 = vst [vmem:[#allocation10 + $0x20] sm:$0xf] %v1217
    %1238 = vst [vmem:[#allocation10 + $0x24] sm:$0xf] %v1218
    // Predicated region
    $region30: #{tpu_custom_call.1} parent=1 // pred_check
      _
    $region31: #{tpu_custom_call.1} parent=1 // pred_check_branch
      %1240 = sbr.rel (0) target = $region33
    $region32: #{tpu_custom_call.1} parent=1 // pred_region
      %s1242 = ssub.s32 640, 640
      %1243 = vsyncadd [#allocation4], %s1242
      %s1244 = sshll.u32 [#allocation7], 4
      %s1245 = int_to_ptr.vmem [resolvable:$true] %s1244
      %1250 = dma.vmem_to_hbm [thread:$0]  %s1245, 640, %s5, [#allocation4], 64, 64, 4
    $region33: #{tpu_custom_call.1} parent=1 // pred_fallthru
      _
    // Predicated region
    $region34: #{tpu_custom_call.1} parent=1 // pred_check
      _
    $region35: #{tpu_custom_call.1} parent=1 // pred_check_branch
      %1252 = sbr.rel (0) target = $region37
    $region36: #{tpu_custom_call.1} parent=1 // pred_region
      %s1254 = ssub.s32 128, 128
      %1255 = vsyncadd [#allocation9], %s1254
      %s1257 = sshll.u32 [#allocation8], 4
      %s1258 = int_to_ptr.vmem [resolvable:$true] %s1257
      %1260 = dma.vmem_to_hbm [thread:$0]  %s1258, 128, %s6, [#allocation9]
    $region37: #{tpu_custom_call.1} parent=1 // pred_fallthru
      _
    // Predicated region
    $region38: #{tpu_custom_call.1} parent=1 // pred_check
      _
    $region39: #{tpu_custom_call.1} parent=1 // pred_check_branch
      %1262 = sbr.rel (0) target = $region41
    $region40: #{tpu_custom_call.1} parent=1 // pred_region
      %s1264 = ssub.s32 640, 640
      %1265 = vsyncadd [#allocation9], %s1264
      %s1266 = sshll.u32 [#allocation10], 4
      %s1267 = int_to_ptr.vmem [resolvable:$true] %s1266
      %1272 = dma.vmem_to_hbm [thread:$0]  %s1267, 640, %s7, [#allocation9], 64, 64, 4
    $region41: #{tpu_custom_call.1} parent=1 // pred_fallthru
      _
    // Predicated region
    $region42: #{tpu_custom_call.1} parent=1 // pred_check
      _
    $region43: #{tpu_custom_call.1} parent=1 // pred_check_branch
      %1274 = sbr.rel (0) target = $region45
    $region44: #{tpu_custom_call.1} parent=1 // pred_region
      %1275 = dma.done [#allocation4], 640
    $region45: #{tpu_custom_call.1} parent=1 // pred_fallthru
      _
    // Predicated region
    $region46: #{tpu_custom_call.1} parent=1 // pred_check
      _
    $region47: #{tpu_custom_call.1} parent=1 // pred_check_branch
      %1277 = sbr.rel (0) target = $region49
    $region48: #{tpu_custom_call.1} parent=1 // pred_region
      %1278 = dma.done [#allocation9], 128
    $region49: #{tpu_custom_call.1} parent=1 // pred_fallthru
      _
    // Predicated region
    $region50: #{tpu_custom_call.1} parent=1 // pred_check
      _
    $region51: #{tpu_custom_call.1} parent=1 // pred_check_branch
      %1280 = sbr.rel (0) target = $region53
    $region52: #{tpu_custom_call.1} parent=1 // pred_region
      %1281 = dma.done [#allocation9], 640
    $region53: #{tpu_custom_call.1} parent=1 // pred_fallthru
      _
    %1282 = vsyncpa [#allocation3], 1
    %1283 = vsyncpa [#allocation6], 1
    %1284 = vsyncpa [#allocation4], 1
    %1285 = vsyncpa [#allocation9], 1

</llo_original>
